<compile_context>
chip_gen: v7x
topology: tpu7x:2x2x1
jax: 0.10.0
libtpu: 0.0.40
codegen_flags: <defaults>
</compile_context>

<pallas_src>
import jax
import jax.numpy as jnp
from jax.experimental import pallas as pl
from jax.experimental.pallas import tpu as pltpu

NPOSE_LOWER = 9   # logical output size of the head
OUT_PAD = 128     # lane-dense padded output width


def _round_up(a: int, m: int) -> int:
    return -(-a // m) * m


def fc_weight_kernel(x_ref, w1_ref, b1_ref, w2_ref, b2_ref, o_ref):
    # x: (TM, C) bf16, w1: (C, H) bf16, b1: (1, H) f32,
    # w2: (H, OUT_PAD) bf16, b2: (1, OUT_PAD) f32, o: (TM, OUT_PAD) f32
    h = jnp.dot(x_ref[...], w1_ref[...], preferred_element_type=jnp.float32)
    h = jnp.maximum(h + b1_ref[...], 0.0)                       # ReLU in f32
    out = jnp.dot(h.astype(w2_ref.dtype), w2_ref[...],
                  preferred_element_type=jnp.float32)
    out = out + b2_ref[...]
    # sigmoid(x) = 1 / (1 + exp(-x)); exp + approx reciprocal both go to EUP.
    o_ref[...] = pl.reciprocal(1.0 + jnp.exp(-out), approx=True)


def fc_weight_forward(feats, feats_zoom, w1, b1, w2, b2, *, tm=512):
    """Pallas equivalent of FCWeight.forward. `feats` is unused (as in PyTorch)."""
    del feats
    n, c = feats_zoom.shape
    hdim = w1.shape[1]
    out_dim = w2.shape[1]

    # Row-tile size: at most `tm`, multiple of 8, batch padded to a multiple.
    tile = min(tm, _round_up(n, 8))
    n_pad = _round_up(n, tile)

    # bf16 inputs / weights; f32 biases (added to the f32 accumulator).
    x = feats_zoom.astype(jnp.bfloat16)
    if n_pad != n:
        x = jnp.pad(x, ((0, n_pad - n), (0, 0)))
    w1b = w1.astype(jnp.bfloat16)
    w2p = jnp.pad(w2, ((0, 0), (0, OUT_PAD - out_dim))).astype(jnp.bfloat16)
    b2p = jnp.pad(b2, ((0, 0), (0, OUT_PAD - out_dim))).astype(jnp.float32)
    b1f = b1.astype(jnp.float32)

    grid = (n_pad // tile,)

    cost = pl.CostEstimate(
        flops=2 * n_pad * (c * hdim + hdim * OUT_PAD),
        transcendentals=n_pad * OUT_PAD,
        bytes_accessed=(x.size * 2                # bf16 x stream
                        + w1b.size * 2 + w2p.size * 2
                        + b1f.size * 4 + b2p.size * 4
                        + n_pad * OUT_PAD * 4),   # f32 output
    )

    out = pl.pallas_call(
        fc_weight_kernel,
        out_shape=jax.ShapeDtypeStruct((n_pad, OUT_PAD), jnp.float32),
        grid_spec=pltpu.PrefetchScalarGridSpec(
            num_scalar_prefetch=0,
            grid=grid,
            in_specs=[
                pl.BlockSpec((tile, c), lambda i: (i, 0)),       # x tile (streamed)
                pl.BlockSpec((c, hdim), lambda i: (0, 0)),       # w1 (resident)
                pl.BlockSpec((1, hdim), lambda i: (0, 0)),       # b1 (resident)
                pl.BlockSpec((hdim, OUT_PAD), lambda i: (0, 0)), # w2 (resident)
                pl.BlockSpec((1, OUT_PAD), lambda i: (0, 0)),    # b2 (resident)
            ],
            out_specs=pl.BlockSpec((tile, OUT_PAD), lambda i: (i, 0)),
        ),
        compiler_params=pltpu.CompilerParams(
            dimension_semantics=("parallel",),
        ),
        cost_estimate=cost,
    )(x, w1b, b1f, w2p, b2p)

    return out[:n, :out_dim]


def init_params(key, context_features, num_features):
    """Deterministic parameter init mirroring the PyTorch module's __init__."""
    k1, k2, k3 = jax.random.split(key, 3)

    # Layer 0: nn.Linear default init (uniform(-1/sqrt(in), 1/sqrt(in)))
    bound1 = 1.0 / jnp.sqrt(context_features)
    w1 = jax.random.uniform(
        k1, (context_features, num_features), jnp.float32, -bound1, bound1
    )
    b1 = jax.random.uniform(k2, (1, num_features), jnp.float32, -bound1, bound1)

    # Layer 2: xavier_uniform_ with gain=0.02; bias keeps nn.Linear default.
    fan_in, fan_out = num_features, NPOSE_LOWER
    limit = 0.02 * jnp.sqrt(6.0 / (fan_in + fan_out))
    w2 = jax.random.uniform(
        k3, (num_features, NPOSE_LOWER), jnp.float32, -limit, limit
    )
    bound2 = 1.0 / jnp.sqrt(num_features)
    b2 = jax.random.uniform(
        jax.random.fold_in(key, 42), (1, NPOSE_LOWER), jnp.float32, -bound2, bound2
    )
    return w1, b1, w2, b2


if __name__ == "__main__":
    # Small shapes consistent with the module:
    #   cfg.MODEL.FLOW.CONTEXT_FEATURES = 32, cfg.MODEL.FC_HEAD.NUM_FEATURES = 32
    batch = 2
    context_features = 32
    num_features = 32

    key = jax.random.PRNGKey(0)
    kx, kz, kp = jax.random.split(key, 3)

    feats = jax.random.normal(kx, (batch, context_features), jnp.float32)       # unused
    feats_zoom = jax.random.normal(kz, (batch, context_features), jnp.float32)

    w1, b1, w2, b2 = init_params(kp, context_features, num_features)

    pred_weights = fc_weight_forward(feats, feats_zoom, w1, b1, w2, b2)
    pred_weights = jax.block_until_ready(pred_weights)

    # Plain-JAX reference with the same bf16 input/weight casts (f32 accumulate).
    xb = feats_zoom.astype(jnp.bfloat16).astype(jnp.float32)
    w1b = w1.astype(jnp.bfloat16).astype(jnp.float32)
    w2b = w2.astype(jnp.bfloat16).astype(jnp.float32)
    hb = jnp.maximum(xb @ w1b + b1, 0.0)
    hb = hb.astype(jnp.bfloat16).astype(jnp.float32)
    ref = jax.nn.sigmoid(hb @ w2b + b2)

    assert pred_weights.shape == (batch, NPOSE_LOWER)
    assert jnp.allclose(pred_weights, ref, atol=1e-2, rtol=1e-2), (
        f"max abs err {jnp.max(jnp.abs(pred_weights - ref))}"
    )

    print("KERNEL_OK")
</pallas_src>

<mosaic_0001>
module attributes {stable_mosaic.version = 11 : i64} {
  func.func @fc_weight_kernel(%arg0: i32, %arg1: memref<8x32xbf16, #tpu.memory_space<vmem>>, %arg2: memref<32x32xbf16, #tpu.memory_space<vmem>>, %arg3: memref<1x32xf32, #tpu.memory_space<vmem>>, %arg4: memref<32x128xbf16, #tpu.memory_space<vmem>>, %arg5: memref<1x128xf32, #tpu.memory_space<vmem>>, %arg6: memref<8x128xf32, #tpu.memory_space<vmem>>) attributes {dimension_semantics = [#tpu.dimension_semantics<parallel>], iteration_bounds = array<i64: 1>, scalar_prefetch = 0 : i64, scratch_operands = 0 : i64, tpu.core_type = #tpu.core_type<tc>, window_params = [{transform_indices = @transform_0, window_bounds = array<i64: 8, 32>}, {pipeline_mode = #tpu.pipeline_mode<synchronous>, transform_indices = @transform_1, window_bounds = array<i64: 32, 32>}, {pipeline_mode = #tpu.pipeline_mode<synchronous>, transform_indices = @transform_2, window_bounds = array<i64: 1, 32>}, {pipeline_mode = #tpu.pipeline_mode<synchronous>, transform_indices = @transform_3, window_bounds = array<i64: 32, 128>}, {pipeline_mode = #tpu.pipeline_mode<synchronous>, transform_indices = @transform_4, window_bounds = array<i64: 1, 128>}, {transform_indices = @transform_5, window_bounds = array<i64: 8, 128>}]} {
    %c0 = arith.constant 0 : index
    %c0_0 = arith.constant 0 : index
    %0 = vector.load %arg1[%c0, %c0_0] : memref<8x32xbf16, #tpu.memory_space<vmem>>, vector<8x32xbf16>
    %c0_1 = arith.constant 0 : index
    %c0_2 = arith.constant 0 : index
    %1 = vector.load %arg2[%c0_1, %c0_2] : memref<32x32xbf16, #tpu.memory_space<vmem>>, vector<32x32xbf16>
    %cst = arith.constant dense<0.000000e+00> : vector<8x32xf32>
    %2 = tpu.matmul %0, %1, %cst {dimension_numbers = #tpu.dot_dimension_numbers<[1], [0], [0], [1], [0, 0, 1, 1], [], []>} : vector<8x32xbf16>, vector<32x32xbf16>, vector<8x32xf32> -> vector<8x32xf32>
    %c0_3 = arith.constant 0 : index
    %c0_4 = arith.constant 0 : index
    %3 = vector.load %arg3[%c0_3, %c0_4] : memref<1x32xf32, #tpu.memory_space<vmem>>, vector<1x32xf32>
    %4 = vector.broadcast %3 : vector<1x32xf32> to vector<8x32xf32>
    %5 = arith.addf %2, %4 : vector<8x32xf32>
    %cst_5 = arith.constant 0.000000e+00 : f32
    %6 = vector.broadcast %cst_5 : f32 to vector<8x32xf32>
    %7 = arith.maximumf %5, %6 : vector<8x32xf32>
    %8 = arith.truncf %7 : vector<8x32xf32> to vector<8x32xbf16>
    %c0_6 = arith.constant 0 : index
    %c0_7 = arith.constant 0 : index
    %9 = vector.load %arg4[%c0_6, %c0_7] : memref<32x128xbf16, #tpu.memory_space<vmem>>, vector<32x128xbf16>
    %cst_8 = arith.constant dense<0.000000e+00> : vector<8x128xf32>
    %10 = tpu.matmul %8, %9, %cst_8 {dimension_numbers = #tpu.dot_dimension_numbers<[1], [0], [0], [1], [0, 0, 1, 1], [], []>} : vector<8x32xbf16>, vector<32x128xbf16>, vector<8x128xf32> -> vector<8x128xf32>
    %c0_9 = arith.constant 0 : index
    %c0_10 = arith.constant 0 : index
    %11 = vector.load %arg5[%c0_9, %c0_10] : memref<1x128xf32, #tpu.memory_space<vmem>>, vector<1x128xf32>
    %12 = vector.broadcast %11 : vector<1x128xf32> to vector<8x128xf32>
    %13 = arith.addf %10, %12 : vector<8x128xf32>
    %cst_11 = arith.constant 0.000000e+00 : f32
    %14 = vector.broadcast %cst_11 : f32 to vector<8x128xf32>
    %15 = arith.subf %14, %13 : vector<8x128xf32>
    %16 = math.exp %15 : vector<8x128xf32>
    %cst_12 = arith.constant 1.000000e+00 : f32
    %17 = vector.broadcast %cst_12 : f32 to vector<8x128xf32>
    %18 = arith.addf %17, %16 : vector<8x128xf32>
    %19 = tpu.reciprocal %18 {approx = true} : vector<8x128xf32> -> vector<8x128xf32>
    %c0_13 = arith.constant 0 : index
    %c0_14 = arith.constant 0 : index
    %20 = vector.load %arg6[%c0_13, %c0_14] : memref<8x128xf32, #tpu.memory_space<vmem>>, vector<8x128xf32>
    tpu.vector_store %arg6[%c0_13, %c0_14], %19 {strides = array<i32>} : memref<8x128xf32, #tpu.memory_space<vmem>>, vector<8x128xf32>,
    return
  }
  func.func @transform_0(%arg0: i32) -> (i32, i32) {
    %c0_i32 = arith.constant 0 : i32
    %c0_i32_0 = arith.constant 0 : i32
    return %arg0, %c0_i32 : i32, i32
  }
  func.func @transform_1(%arg0: i32) -> (i32, i32) {
    %c0_i32 = arith.constant 0 : i32
    %c0_i32_0 = arith.constant 0 : i32
    %c0_i32_1 = arith.constant 0 : i32
    return %c0_i32, %c0_i32_0 : i32, i32
  }
  func.func @transform_2(%arg0: i32) -> (i32, i32) {
    %c0_i32 = arith.constant 0 : i32
    %c0_i32_0 = arith.constant 0 : i32
    %c0_i32_1 = arith.constant 0 : i32
    return %c0_i32, %c0_i32_0 : i32, i32
  }
  func.func @transform_3(%arg0: i32) -> (i32, i32) {
    %c0_i32 = arith.constant 0 : i32
    %c0_i32_0 = arith.constant 0 : i32
    %c0_i32_1 = arith.constant 0 : i32
    return %c0_i32, %c0_i32_0 : i32, i32
  }
  func.func @transform_4(%arg0: i32) -> (i32, i32) {
    %c0_i32 = arith.constant 0 : i32
    %c0_i32_0 = arith.constant 0 : i32
    %c0_i32_1 = arith.constant 0 : i32
    return %c0_i32, %c0_i32_0 : i32, i32
  }
  func.func @transform_5(%arg0: i32) -> (i32, i32) {
    %c0_i32 = arith.constant 0 : i32
    %c0_i32_0 = arith.constant 0 : i32
    return %arg0, %c0_i32 : i32, i32
  }
}

</mosaic_0001>

<llo_original>
// kernel: tpu_custom_call.1
$region0: #{tpu_custom_call.1}
  #allocation0 [shape = 'u32[]', space=smem, size = 0x4, offset = 0x4, fixed_abs, tag = 'smem constant byte address 0x4 - core index']
  #allocation1 [shape = 'u32[144,128]{1,0:T(1,128)}', space=vmem, size = 0x12000, scoped, tag = 'internal scratch']
  %s0 = inlined_call_operand.hbm [shape: bf16[8,32], index: 0, kind: input, shape index: {}]
  %s1 = inlined_call_operand.hbm [shape: bf16[32,32], index: 1, kind: input, shape index: {}]
  %s2 = inlined_call_operand.vmem [shape: f32[1,32], index: 2, kind: input, shape index: {}]
  %s3 = inlined_call_operand.hbm [shape: bf16[32,128], index: 3, kind: input, shape index: {}]
  %s4 = inlined_call_operand.vmem [shape: f32[1,128], index: 4, kind: input, shape index: {}]
  %s5 = inlined_call_operand.hbm [shape: f32[8,128], index: 5, kind: output, shape index: {}]
  %s6 = sld [smem:[#allocation0]]
  $region42: #{tpu_custom_call.1} parent=0
    _
  %s8 = ssub.s32 1, %s6
  %s9 = scalar_select 0, %s8, %s6
  $region1: #{tpu_custom_call.1} parent=0
    #allocation2 [shape = 'u8[2048]{0}', space=vmem, size = 0x800, scoped, tag = 'input window, operand 0, single buffered']
    #allocation3 [shape = 's32[1]{0}', space=sflag, size = 0x4, scoped, tag = 'scoped memory for tpu_custom_call.1']
    #allocation4 [shape = 's32[1]{0}', space=sflag, size = 0x4, scoped, tag = 'scoped memory for tpu_custom_call.1']
    #allocation5 [shape = 'u8[8192]{0}', space=vmem, size = 0x2000, scoped, tag = 'input window, operand 1, single buffered']
    #allocation6 [shape = 's32[1]{0}', space=sflag, size = 0x4, scoped, tag = 'scoped memory for tpu_custom_call.1']
    #allocation7 [shape = 'u8[8192]{0}', space=vmem, size = 0x2000, scoped, tag = 'input window, operand 3, single buffered']
    #allocation8 [shape = 'u8[4096]{0}', space=vmem, size = 0x1000, scoped, tag = 'output window, operand 0, single buffered']
    %10 = vsyncpa [#allocation3], 0
    %11 = vsyncpa [#allocation6], 0
    %12 = vsyncpa [#allocation4], 0
    // Predicated region
    $region2: #{tpu_custom_call.1} parent=1 // pred_check
      _
    $region3: #{tpu_custom_call.1} parent=1 // pred_check_branch
      %14 = sbr.rel (0) target = $region5
    $region4: #{tpu_custom_call.1} parent=1 // pred_region
      %s16 = ssub.s32 64, 64
      %17 = vsyncadd [#allocation3], %s16
      %s19 = sshll.u32 [#allocation2], 4
      %s20 = int_to_ptr.vmem [resolvable:$true] %s19
      %22 = dma.hbm_to_vmem [thread:$0]  %s0, 64, %s20, [#allocation3]
    $region5: #{tpu_custom_call.1} parent=1 // pred_fallthru
      _
    // Predicated region
    $region6: #{tpu_custom_call.1} parent=1 // pred_check
      _
    $region7: #{tpu_custom_call.1} parent=1 // pred_check_branch
      %24 = sbr.rel (0) target = $region9
    $region8: #{tpu_custom_call.1} parent=1 // pred_region
      %s26 = ssub.s32 256, 256
      %27 = vsyncadd [#allocation6], %s26
      %s28 = sshll.u32 [#allocation5], 4
      %s29 = int_to_ptr.vmem [resolvable:$true] %s28
      %34 = dma.hbm_to_vmem [thread:$0]  %s1, 256, %s29, [#allocation6], 64, 64, 4
    $region9: #{tpu_custom_call.1} parent=1 // pred_fallthru
      _
    // Predicated region
    $region10: #{tpu_custom_call.1} parent=1 // pred_check
      _
    $region11: #{tpu_custom_call.1} parent=1 // pred_check_branch
      %36 = sbr.rel (0) target = $region13
    $region12: #{tpu_custom_call.1} parent=1 // pred_region
      _
    $region13: #{tpu_custom_call.1} parent=1 // pred_fallthru
      _
    // Predicated region
    $region14: #{tpu_custom_call.1} parent=1 // pred_check
      _
    $region15: #{tpu_custom_call.1} parent=1 // pred_check_branch
      %38 = sbr.rel (0) target = $region17
    $region16: #{tpu_custom_call.1} parent=1 // pred_region
      %s40 = ssub.s32 256, 256
      %41 = vsyncadd [#allocation6], %s40
      %s42 = sshll.u32 [#allocation7], 4
      %s43 = int_to_ptr.vmem [resolvable:$true] %s42
      %48 = dma.hbm_to_vmem [thread:$0]  %s3, 256, %s43, [#allocation6], 64, 64, 4
    $region17: #{tpu_custom_call.1} parent=1 // pred_fallthru
      _
    // Predicated region
    $region18: #{tpu_custom_call.1} parent=1 // pred_check
      _
    $region19: #{tpu_custom_call.1} parent=1 // pred_check_branch
      %50 = sbr.rel (0) target = $region21
    $region20: #{tpu_custom_call.1} parent=1 // pred_region
      _
    $region21: #{tpu_custom_call.1} parent=1 // pred_fallthru
      _
    // Predicated region
    $region22: #{tpu_custom_call.1} parent=1 // pred_check
      _
    $region23: #{tpu_custom_call.1} parent=1 // pred_check_branch
      %52 = sbr.rel (0) target = $region25
    $region24: #{tpu_custom_call.1} parent=1 // pred_region
      %53 = dma.done [#allocation3], 64
    $region25: #{tpu_custom_call.1} parent=1 // pred_fallthru
      _
    // Predicated region
    $region26: #{tpu_custom_call.1} parent=1 // pred_check
      _
    $region27: #{tpu_custom_call.1} parent=1 // pred_check_branch
      %55 = sbr.rel (0) target = $region29
    $region28: #{tpu_custom_call.1} parent=1 // pred_region
      %56 = dma.done [#allocation6], 256
    $region29: #{tpu_custom_call.1} parent=1 // pred_fallthru
      _
    // Predicated region
    $region30: #{tpu_custom_call.1} parent=1 // pred_check
      _
    $region31: #{tpu_custom_call.1} parent=1 // pred_check_branch
      %58 = sbr.rel (0) target = $region33
    $region32: #{tpu_custom_call.1} parent=1 // pred_region
      %59 = dma.done [#allocation6], 256
    $region33: #{tpu_custom_call.1} parent=1 // pred_fallthru
      _
    %v61 = vld [vmem:[#allocation2] sm:$0xf]
    %v62 = vld [vmem:[#allocation5] sm:$0xf]
    %v63 = vld [vmem:[#allocation5 + $0x4] sm:$0xf]
    %v64 = vld [vmem:[#allocation5 + $0x8] sm:$0xf]
    %v65 = vld [vmem:[#allocation5 + $0xc] sm:$0xf]
    %v66 = vld [vmem:[%s2] sm:$0x1]
    %v68 = vlaneseq
    %v69 = vshrl.u32 %v68, 7
    %v70 = vsub.s32 0, %v69
    %v71 = vrot.slane %v66, %v70
    %v77 = vunpack.c.l.b16 %v62
    %v78 = vunpack.c.l.b16 %v63
    %v79 = vunpack.c.l.b16 %v64
    %v80 = vunpack.c.l.b16 %v65
    %v81 = vpack.c.b16 %v78, %v77
    %v82 = vpack.c.b16 %v80, %v79
    %vm85 = vcmask 261120
    %v87 = vsel %vm85, %v61, 0
    %89 = vmatprep.subr.bf16.mxu0 0
    %90 = vmatpush1.bf16.msra.mxu0 %v81
    %91 = vmatprep.subr.bf16.mxu0 0
    %92 = vmatpush1.bf16.msra.mxu0 %v82
    %93 = vmatprep.subr.bf16.mxu0 0
    %94 = vmatpush1.bf16.msra.mxu0 0
    %95 = vmatprep.subr.bf16.mxu0 0
    %96 = vmatpush1.bf16.msra.mxu0 0
    %97 = vmatprep.subr.bf16.mxu0 0
    %98 = vmatpush1.bf16.msra.mxu0 0
    %99 = vmatprep.subr.bf16.mxu0 0
    %100 = vmatpush1.bf16.msra.mxu0 0
    %101 = vmatprep.subr.bf16.mxu0 0
    %102 = vmatpush1.bf16.msra.mxu0 0
    %103 = vmatprep.subr.bf16.mxu0 0
    %104 = vmatpush1.bf16.msra.mxu0 0
    %105 = vmatprep.subr.bf16.mxu0 0
    %106 = vmatpush1.bf16.msra.mxu0 0
    %107 = vmatprep.subr.bf16.mxu0 0
    %108 = vmatpush1.bf16.msra.mxu0 0
    %109 = vmatprep.subr.bf16.mxu0 0
    %110 = vmatpush1.bf16.msra.mxu0 0
    %111 = vmatprep.subr.bf16.mxu0 0
    %112 = vmatpush1.bf16.msra.mxu0 0
    %113 = vmatprep.subr.bf16.mxu0 0
    %114 = vmatpush1.bf16.msra.mxu0 0
    %115 = vmatprep.subr.bf16.mxu0 0
    %116 = vmatpush1.bf16.msra.mxu0 0
    %117 = vmatprep.subr.bf16.mxu0 0
    %118 = vmatpush1.bf16.msra.mxu0 0
    %119 = vmatprep.subr.bf16.mxu0 0
    %120 = vmatpush1.bf16.msra.mxu0 0
    %121 = vmatprep.mubr.bf16.mxu0 0
    %122 = vmatmul.mubr.bf16.gmra.mrb[0].mxu0 %v87
    %v123 = vpop.f32.mrb[0].mxu0
    %v124 = vadd.f32 %v71, %v123
    %v125 = vpop.f32.mrb[0].mxu0
    %v126 = vpop.f32.mrb[0].mxu0
    %v127 = vpop.f32.mrb[0].mxu0
    %128 = vdwg.mxu0
    %v129 = vmax.f32 %v124, 0.0
    %v130 = vpack.c.bf16 %v129, %v129
    %v131 = vld [vmem:[#allocation7] sm:$0xf]
    %v132 = vld [vmem:[#allocation7 + $0x4] sm:$0xf]
    %v133 = vld [vmem:[#allocation7 + $0x8] sm:$0xf]
    %v134 = vld [vmem:[#allocation7 + $0xc] sm:$0xf]
    %v135 = vld [vmem:[%s4] sm:$0x1]
    %v137 = vlaneseq
    %v138 = vshrl.u32 %v137, 7
    %v139 = vsub.s32 0, %v138
    %v140 = vrot.slane %v135, %v139
    %v146 = vunpack.c.l.b16 %v131
    %v147 = vunpack.c.l.b16 %v132
    %v148 = vunpack.c.l.b16 %v133
    %v149 = vunpack.c.l.b16 %v134
    %v150 = vpack.c.b16 %v147, %v146
    %v151 = vpack.c.b16 %v149, %v148
    %v155 = vsel %vm85, %v130, 0
    %157 = vmatprep.subr.bf16.mxu0 0
    %158 = vmatpush1.bf16.msra.mxu0 %v150
    %159 = vmatprep.subr.bf16.mxu0 0
    %160 = vmatpush1.bf16.msra.mxu0 %v151
    %161 = vmatprep.subr.bf16.mxu0 0
    %162 = vmatpush1.bf16.msra.mxu0 0
    %163 = vmatprep.subr.bf16.mxu0 0
    %164 = vmatpush1.bf16.msra.mxu0 0
    %165 = vmatprep.subr.bf16.mxu0 0
    %166 = vmatpush1.bf16.msra.mxu0 0
    %167 = vmatprep.subr.bf16.mxu0 0
    %168 = vmatpush1.bf16.msra.mxu0 0
    %169 = vmatprep.subr.bf16.mxu0 0
    %170 = vmatpush1.bf16.msra.mxu0 0
    %171 = vmatprep.subr.bf16.mxu0 0
    %172 = vmatpush1.bf16.msra.mxu0 0
    %173 = vmatprep.subr.bf16.mxu0 0
    %174 = vmatpush1.bf16.msra.mxu0 0
    %175 = vmatprep.subr.bf16.mxu0 0
    %176 = vmatpush1.bf16.msra.mxu0 0
    %177 = vmatprep.subr.bf16.mxu0 0
    %178 = vmatpush1.bf16.msra.mxu0 0
    %179 = vmatprep.subr.bf16.mxu0 0
    %180 = vmatpush1.bf16.msra.mxu0 0
    %181 = vmatprep.subr.bf16.mxu0 0
    %182 = vmatpush1.bf16.msra.mxu0 0
    %183 = vmatprep.subr.bf16.mxu0 0
    %184 = vmatpush1.bf16.msra.mxu0 0
    %185 = vmatprep.subr.bf16.mxu0 0
    %186 = vmatpush1.bf16.msra.mxu0 0
    %187 = vmatprep.subr.bf16.mxu0 0
    %188 = vmatpush1.bf16.msra.mxu0 0
    %189 = vmatprep.mubr.bf16.mxu0 0
    %190 = vmatmul.mubr.bf16.gmra.mrb[0].mxu0 %v155
    %v191 = vpop.f32.mrb[0].mxu0
    %v192 = vadd.f32 %v140, %v191
    %v193 = vpop.f32.mrb[0].mxu0
    %v194 = vpop.f32.mrb[0].mxu0
    %v195 = vpop.f32.mrb[0].mxu0
    %196 = vdwg.mxu0
    %v197 = vsub.f32 0.0, %v192
    %v198 = vmul.f32 %v197, 1.442695
    %v199 = vpow.pop %v198
    %v200 = vadd.f32 %v199, 1.0
    %v201 = vrcp.pop %v200
    %202 = vst [vmem:[#allocation8] sm:$0xff] %v201
    // Predicated region
    $region34: #{tpu_custom_call.1} parent=1 // pred_check
      _
    $region35: #{tpu_custom_call.1} parent=1 // pred_check_branch
      %204 = sbr.rel (0) target = $region37
    $region36: #{tpu_custom_call.1} parent=1 // pred_region
      %s206 = ssub.s32 128, 128
      %207 = vsyncadd [#allocation4], %s206
      %s209 = sshll.u32 [#allocation8], 4
      %s210 = int_to_ptr.vmem [resolvable:$true] %s209
      %212 = dma.vmem_to_hbm [thread:$0]  %s210, 128, %s5, [#allocation4]
    $region37: #{tpu_custom_call.1} parent=1 // pred_fallthru
      _
    // Predicated region
    $region38: #{tpu_custom_call.1} parent=1 // pred_check
      _
    $region39: #{tpu_custom_call.1} parent=1 // pred_check_branch
      %214 = sbr.rel (0) target = $region41
    $region40: #{tpu_custom_call.1} parent=1 // pred_region
      %215 = dma.done [#allocation4], 128
    $region41: #{tpu_custom_call.1} parent=1 // pred_fallthru
      _
    %216 = vsyncpa [#allocation3], 1
    %217 = vsyncpa [#allocation6], 1
    %218 = vsyncpa [#allocation4], 1

</llo_original>
